<compile_context>
chip_gen: v5e
topology: v5e:2x2
jax: 0.10.0
libtpu: 0.0.40
codegen_flags: <defaults>
</compile_context>

<pallas_src>
import jax
import jax.numpy as jnp
from jax.experimental import pallas as pl
from jax.experimental.pallas import tpu as pltpu


# Single full block (grid=1) up to this many rows: 65536 * 6 * 4 B = 1.5 MiB.
_SINGLE_BLOCK_ROWS = 65536
# Per-tile cap when tiling large N (1.5 MiB f32 per block, double-buffered
# in+out stays well under every generation's scoped-VMEM default).
_MAX_TILE_ROWS = 65536


def _needs_f32_promote_for_low_precision():
    """v5e-class chips have no bf16 VALU -> promote low-precision math to f32;
    v6e / v7x multiply bf16 natively."""
    try:
        kind = jax.devices()[0].device_kind.lower()
    except Exception:
        return True
    return not ("v6" in kind or "v7" in kind)


def _make_roi_rescale_kernel(w_sf, h_sf, compute_dtype):
    """Kernel factory: scale factors are baked in as trace-time constants."""

    def kernel(rois_ref, out_ref):
        r = rois_ref[...].astype(compute_dtype)
        # Per-column scale [1, 1, 1, w_sf, h_sf, 1] built from closure floats:
        # col 3 (width) * w_sf, col 4 (height) * h_sf, everything else * 1.
        col = jax.lax.broadcasted_iota(jnp.int32, r.shape, 1)
        scale = jnp.where(col == 3, w_sf,
                          jnp.where(col == 4, h_sf, 1.0)).astype(compute_dtype)
        out_ref[...] = (r * scale).astype(out_ref.dtype)

    return kernel


def roi_rescale_pallas(rois, scale_factor, *, donate_rois=True):
    """Pallas equivalent of OBBBaseRoIExtractor.roi_rescale.

    rois: (N, 6) [batch_idx, cx, cy, w, h, theta]; scale_factor: float or
    (h_scale, w_scale) pair (torch _pair semantics: col 3 (w) * w_scale,
    col 4 (h) * h_scale)."""
    if scale_factor is None:
        return rois
    n, c = rois.shape
    if n == 0:
        return rois

    # _pair: scalar -> (s, s); 2-sequence kept as (h, w).
    if isinstance(scale_factor, (tuple, list)):
        h_sf, w_sf = float(scale_factor[0]), float(scale_factor[1])
    else:
        h_sf = w_sf = float(scale_factor)

    if rois.dtype == jnp.float32:
        compute_dtype = jnp.float32
    else:
        compute_dtype = (jnp.float32 if _needs_f32_promote_for_low_precision()
                         else rois.dtype)

    # Native (N, 6) layout: rows on sublanes (tile must be a multiple of 8 or
    # the full N), the 6 columns on lanes (full dim -> legal block shape).
    if n <= _SINGLE_BLOCK_ROWS:
        tm = n                              # one block, grid = 1
    else:
        half = -(-n // 2)                   # balanced 2-way split for megacore
        tm = min(_MAX_TILE_ROWS, ((half + 7) // 8) * 8)
    grid = (pl.cdiv(n, tm),)

    kernel = _make_roi_rescale_kernel(w_sf, h_sf, compute_dtype)

    return pl.pallas_call(
        kernel,
        out_shape=jax.ShapeDtypeStruct((n, c), rois.dtype),
        grid=grid,
        in_specs=[pl.BlockSpec((tm, c), lambda i: (i, 0))],
        out_specs=pl.BlockSpec((tm, c), lambda i: (i, 0)),
        input_output_aliases=({0: 0} if donate_rois else {}),
        compiler_params=pltpu.CompilerParams(
            dimension_semantics=("parallel",)),   # shards row tiles on v7x's 2 TCs
    )(rois)


class OBBBaseRoIExtractorPallas:
    """JAX/Pallas port of OBBBaseRoIExtractor (no learnable parameters)."""

    def __init__(self, roi_layer, out_channels, featmap_strides):
        # TODO(synk): build_roi_layers needs mmdet's RoIAlignRotated-style ops
        # (data-dependent rotated bilinear gather per RoI); not built here.
        self.roi_layer_cfg = dict(roi_layer)
        self.out_channels = out_channels
        self.featmap_strides = featmap_strides
        self.spatial_scales = [1.0 / s for s in featmap_strides]
        self.fp16_enabled = False

    @property
    def num_inputs(self):
        return len(self.featmap_strides)

    def init_weights(self):
        pass

    def roi_rescale(self, rois, scale_factor):
        return roi_rescale_pallas(rois, scale_factor)

    # forward(feats, rois, roi_scale_factor=None) is abstract in the
    # reference module; concrete subclasses define it.


if __name__ == "__main__":
    key = jax.random.PRNGKey(0)
    n_rois = 8
    # rois: (n, 6) = [batch_idx, cx, cy, w, h, theta]
    k1, k2 = jax.random.split(key)
    batch_idx = jax.random.randint(k1, (n_rois, 1), 0, 2).astype(jnp.float32)
    geom = jax.random.uniform(k2, (n_rois, 5), dtype=jnp.float32) * 32.0
    rois = jnp.concatenate([batch_idx, geom], axis=1)

    extractor = OBBBaseRoIExtractorPallas(
        roi_layer=dict(type="RoIAlignRotated", out_size=7, sample_num=2),
        out_channels=4,
        featmap_strides=[4, 8, 16, 32],
    )
    assert extractor.num_inputs == 4

    # Scalar scale factor.
    out = extractor.roi_rescale(rois, 1.5)
    out = jax.block_until_ready(out)
    ref = rois.at[:, 3].multiply(1.5).at[:, 4].multiply(1.5)
    assert out.shape == rois.shape and out.dtype == rois.dtype
    assert jnp.allclose(out, ref, atol=1e-6, rtol=1e-6)

    # Anisotropic (h_scale, w_scale) pair: col 3 (w) * 2.0, col 4 (h) * 0.5.
    out_pair = jax.block_until_ready(extractor.roi_rescale(rois, (0.5, 2.0)))
    ref_pair = rois.at[:, 3].multiply(2.0).at[:, 4].multiply(0.5)
    assert jnp.allclose(out_pair, ref_pair, atol=1e-6, rtol=1e-6)

    # None path and empty-RoI path short-circuit.
    out_none = extractor.roi_rescale(rois, None)
    assert jnp.array_equal(out_none, rois)
    empty = jnp.zeros((0, 6), dtype=jnp.float32)
    assert extractor.roi_rescale(empty, 1.5).shape == (0, 6)

    # Larger, non-multiple-of-8 row count exercises the same single-block path.
    big = jax.random.uniform(key, (1003, 6), dtype=jnp.float32) * 64.0
    out_big = jax.block_until_ready(extractor.roi_rescale(big, 2.0))
    ref_big = big.at[:, 3].multiply(2.0).at[:, 4].multiply(2.0)
    assert jnp.allclose(out_big, ref_big, atol=1e-6, rtol=1e-6)

    print("KERNEL_OK")
</pallas_src>

<mosaic_0001>
module attributes {stable_mosaic.version = 11 : i64} {
  func.func @kernel(%arg0: i32, %arg1: memref<8x6xf32, #tpu.memory_space<vmem>>, %arg2: memref<8x6xf32, #tpu.memory_space<vmem>>) attributes {dimension_semantics = [#tpu.dimension_semantics<parallel>], iteration_bounds = array<i64: 1>, scalar_prefetch = 0 : i64, scratch_operands = 0 : i64, tpu.core_type = #tpu.core_type<tc>, window_params = [{transform_indices = @transform_0, window_bounds = array<i64: 8, 6>}, {transform_indices = @transform_1, window_bounds = array<i64: 8, 6>}]} {
    %c0 = arith.constant 0 : index
    %c0_0 = arith.constant 0 : index
    %0 = vector.load %arg1[%c0, %c0_0] : memref<8x6xf32, #tpu.memory_space<vmem>>, vector<8x6xf32>
    %1 = tpu.iota {dimensions = array<i32: 1>} : vector<8x6xi32>
    %c3_i32 = arith.constant 3 : i32
    %2 = vector.broadcast %c3_i32 : i32 to vector<8x6xi32>
    %3 = arith.cmpi eq, %1, %2 : vector<8x6xi32>
    %c4_i32 = arith.constant 4 : i32
    %4 = vector.broadcast %c4_i32 : i32 to vector<8x6xi32>
    %5 = arith.cmpi eq, %1, %4 : vector<8x6xi32>
    %cst = arith.constant 1.500000e+00 : f32
    %cst_1 = arith.constant 1.000000e+00 : f32
    %6 = vector.broadcast %cst : f32 to vector<8x6xf32>
    %7 = vector.broadcast %cst_1 : f32 to vector<8x6xf32>
    %8 = arith.select %5, %6, %7 : vector<8x6xi1>, vector<8x6xf32>
    %cst_2 = arith.constant 1.500000e+00 : f32
    %9 = vector.broadcast %cst_2 : f32 to vector<8x6xf32>
    %10 = arith.select %3, %9, %8 : vector<8x6xi1>, vector<8x6xf32>
    %11 = arith.mulf %0, %10 : vector<8x6xf32>
    %c0_3 = arith.constant 0 : index
    %c0_4 = arith.constant 0 : index
    %12 = vector.load %arg2[%c0_3, %c0_4] : memref<8x6xf32, #tpu.memory_space<vmem>>, vector<8x6xf32>
    tpu.vector_store %arg2[%c0_3, %c0_4], %11 {strides = array<i32>} : memref<8x6xf32, #tpu.memory_space<vmem>>, vector<8x6xf32>,
    return
  }
  func.func @transform_0(%arg0: i32) -> (i32, i32) {
    %c0_i32 = arith.constant 0 : i32
    %c0_i32_0 = arith.constant 0 : i32
    return %arg0, %c0_i32 : i32, i32
  }
  func.func @transform_1(%arg0: i32) -> (i32, i32) {
    %c0_i32 = arith.constant 0 : i32
    %c0_i32_0 = arith.constant 0 : i32
    return %arg0, %c0_i32 : i32, i32
  }
}

</mosaic_0001>

<llo_original>
// kernel: tpu_custom_call.1
$region0: #{tpu_custom_call.1}
  #allocation0 [shape = 'u32[]', space=smem, size = 0x4, offset = 0x4, fixed_abs, tag = 'smem constant byte address 0x4 - core index']
  #allocation1 [shape = 'u32[72,128]{1,0:T(1,128)}', space=vmem, size = 0x9000, scoped, tag = 'internal scratch']
  %s0 = inlined_call_operand.hbm [shape: f32[8,6], index: 0, kind: input, shape index: {}, may-alias: {0,1}]
  %s1 = inlined_call_operand.hbm [shape: f32[8,6], index: 1, kind: output, shape index: {}, may-alias: {0,1}]
  %s2 = sld [smem:[#allocation0]]
  $region18: #{tpu_custom_call.1} parent=0
    _
  %s4 = ssub.s32 1, %s2
  %s5 = scalar_select 0, %s4, %s2
  $region1: #{tpu_custom_call.1} parent=0
    #allocation2 [shape = 'u8[4096]{0}', space=vmem, size = 0x1000, scoped, tag = 'input window, operand 0, single buffered']
    #allocation3 [shape = 's32[1]{0}', space=sflag, size = 0x4, scoped, tag = 'scoped memory for tpu_custom_call.1']
    #allocation4 [shape = 's32[1]{0}', space=sflag, size = 0x4, scoped, tag = 'scoped memory for tpu_custom_call.1']
    #allocation5 [shape = 'u8[4096]{0}', space=vmem, size = 0x1000, scoped, tag = 'output window, operand 0, single buffered']
    %6 = vsyncpa [#allocation3], 0
    %7 = vsyncpa [#allocation4], 0
    // Predicated region
    $region2: #{tpu_custom_call.1} parent=1 // pred_check
      _
    $region3: #{tpu_custom_call.1} parent=1 // pred_check_branch
      %9 = sbr.rel (0) target = $region5
    $region4: #{tpu_custom_call.1} parent=1 // pred_region
      %11 = vsyncadd [#allocation3], 0
      %s13 = sshll.u32 %s0, 4
      %s14 = int_to_ptr.hbm [resolvable:$true] %s13
      %s15 = sshll.u32 [#allocation2], 4
      %s16 = int_to_ptr.vmem [resolvable:$true] %s15
      %18 = dma.hbm_to_vmem [thread:$0]  %s14, 128, %s16, [#allocation3]
    $region5: #{tpu_custom_call.1} parent=1 // pred_fallthru
      _
    // Predicated region
    $region6: #{tpu_custom_call.1} parent=1 // pred_check
      _
    $region7: #{tpu_custom_call.1} parent=1 // pred_check_branch
      %20 = sbr.rel (0) target = $region9
    $region8: #{tpu_custom_call.1} parent=1 // pred_region
      %22 = dma.done [#allocation3], 128
    $region9: #{tpu_custom_call.1} parent=1 // pred_fallthru
      _
    %v23 = vld [vmem:[#allocation2] sm:$0xff]
    %v24 = vlaneseq
    %v25 = vand.u32 %v24, 127
    %vm26 = vcmp.eq.s32.totalorder %v25, 3
    %vm27 = vcmp.eq.s32.totalorder %v25, 4
    %v28 = vsel %vm27, 1.5, 1.0
    %v29 = vsel %vm26, 1.5, %v28
    %v30 = vmul.f32 %v23, %v29
    %vm31 = vcmask 48128
    %32 = vst.msk [vmem:[#allocation5] sm:$0xff] %vm31, %v30
    // Predicated region
    $region10: #{tpu_custom_call.1} parent=1 // pred_check
      _
    $region11: #{tpu_custom_call.1} parent=1 // pred_check_branch
      %34 = sbr.rel (0) target = $region13
    $region12: #{tpu_custom_call.1} parent=1 // pred_region
      %36 = vsyncadd [#allocation4], 0
      %s38 = sshll.u32 [#allocation5], 4
      %s39 = int_to_ptr.vmem [resolvable:$true] %s38
      %s40 = sshll.u32 %s1, 4
      %s41 = int_to_ptr.hbm [resolvable:$true] %s40
      %43 = dma.vmem_to_hbm [thread:$0]  %s39, 128, %s41, [#allocation4]
    $region13: #{tpu_custom_call.1} parent=1 // pred_fallthru
      _
    // Predicated region
    $region14: #{tpu_custom_call.1} parent=1 // pred_check
      _
    $region15: #{tpu_custom_call.1} parent=1 // pred_check_branch
      %45 = sbr.rel (0) target = $region17
    $region16: #{tpu_custom_call.1} parent=1 // pred_region
      %47 = dma.done [#allocation4], 128
    $region17: #{tpu_custom_call.1} parent=1 // pred_fallthru
      _
    %48 = vsyncpa [#allocation3], 1
    %49 = vsyncpa [#allocation4], 1

</llo_original>
